<compile_context>
chip_gen: v7x
topology: tpu7x:2x2x1
jax: 0.10.0
libtpu: 0.0.40
codegen_flags: <defaults>
</compile_context>

<pallas_src>
import functools

import jax
import jax.numpy as jnp
from jax.experimental import pallas as pl
from jax.experimental.pallas import tpu as pltpu

_NEG_INF = -1e9


# ----------------------------------------------------------------------------
# helpers: tile picking + VMEM budgeting
# ----------------------------------------------------------------------------
def _tile(dim, preferred, align):
    """Largest block <= preferred that divides `dim` and is a multiple of
    `align`; falls back to the full dim (always a legal block)."""
    if dim <= preferred:
        return dim
    t = (preferred // align) * align
    while t >= align:
        if dim % t == 0:
            return t
        t -= align
    return dim


def _vmem_limit(*blocks):
    """blocks: (shape, itemsize). Double-buffered estimate + headroom,
    floored at the 32 MiB default and capped at 128 MiB."""
    total = 0
    for shape, itemsize in blocks:
        n = 1
        for d in shape:
            n *= int(d)
        total += 2 * n * int(itemsize)
    return int(min(max(total + (4 << 20), 32 << 20), 128 << 20))


# ----------------------------------------------------------------------------
# Kernel 1: tiled  X @ W + b  (optional fused ReLU), f32 accumulator scratch
# ----------------------------------------------------------------------------
def _matmul_bias_kernel(x_ref, w_ref, b_ref, o_ref, acc_ref, *, activation):
    @pl.when(pl.program_id(2) == 0)
    def _():
        acc_ref[...] = jnp.zeros_like(acc_ref)

    acc_ref[...] += jnp.dot(x_ref[...], w_ref[...],
                            preferred_element_type=jnp.float32)

    @pl.when(pl.program_id(2) == pl.num_programs(2) - 1)
    def _():
        out = acc_ref[...] + b_ref[...].astype(jnp.float32)
        if activation == "relu":
            out = jnp.maximum(out, 0.0)
        o_ref[...] = out.astype(o_ref.dtype)


def linear(x, w, b, *, activation=None, tm_pref=256, tn_pref=512, tk_pref=512):
    M, K = x.shape
    N = w.shape[1]
    tm = _tile(M, tm_pref, 8)
    tn = _tile(N, tn_pref, 128)
    tk = _tile(K, tk_pref, 128)
    itm = x.dtype.itemsize
    vmem = _vmem_limit(((tm, tk), itm), ((tk, tn), itm), ((1, tn), itm),
                       ((tm, tn), itm), ((tm, tn), 4))
    kernel = functools.partial(_matmul_bias_kernel, activation=activation)
    return pl.pallas_call(
        kernel,
        out_shape=jax.ShapeDtypeStruct((M, N), x.dtype),
        grid=(M // tm, N // tn, K // tk),
        in_specs=[
            pl.BlockSpec((tm, tk), lambda i, j, k: (i, k)),
            pl.BlockSpec((tk, tn), lambda i, j, k: (k, j)),
            pl.BlockSpec((1, tn), lambda i, j, k: (0, j)),
        ],
        out_specs=pl.BlockSpec((tm, tn), lambda i, j, k: (i, j)),
        scratch_shapes=[pltpu.VMEM((tm, tn), jnp.float32)],
        compiler_params=pltpu.CompilerParams(
            dimension_semantics=("parallel", "parallel", "arbitrary"),
            vmem_limit_bytes=vmem),
    )(x, w, b.reshape(1, N))


# ----------------------------------------------------------------------------
# Kernel 2: tiled  X @ W + b + residual  followed by LayerNorm over N (fused)
# ----------------------------------------------------------------------------
def _matmul_res_ln_kernel(x_ref, w_ref, b_ref, r_ref, g_ref, beta_ref,
                          o_ref, acc_ref, *, eps):
    @pl.when(pl.program_id(1) == 0)
    def _():
        acc_ref[...] = jnp.zeros_like(acc_ref)

    acc_ref[...] += jnp.dot(x_ref[...], w_ref[...],
                            preferred_element_type=jnp.float32)

    @pl.when(pl.program_id(1) == pl.num_programs(1) - 1)
    def _():
        h = (acc_ref[...] + b_ref[...].astype(jnp.float32)
             + r_ref[...].astype(jnp.float32))
        mu = jnp.mean(h, axis=-1, keepdims=True)
        var = jnp.mean((h - mu) ** 2, axis=-1, keepdims=True)
        y = (h - mu) * jax.lax.rsqrt(var + eps)
        o_ref[...] = (y * g_ref[...].astype(jnp.float32)
                      + beta_ref[...].astype(jnp.float32)).astype(o_ref.dtype)


def linear_residual_ln(x, w, b, residual, gamma, beta, *, eps=1e-5,
                       tm_pref=256, tk_pref=512):
    M, K = x.shape
    N = w.shape[1]
    tm = _tile(M, tm_pref, 8)
    tk = _tile(K, tk_pref, 128)
    itm = x.dtype.itemsize
    vmem = _vmem_limit(((tm, tk), itm), ((tk, N), itm), ((1, N), itm),
                       ((tm, N), itm), ((1, N), itm), ((1, N), itm),
                       ((tm, N), itm), ((tm, N), 4))
    kernel = functools.partial(_matmul_res_ln_kernel, eps=eps)
    return pl.pallas_call(
        kernel,
        out_shape=jax.ShapeDtypeStruct((M, N), x.dtype),
        grid=(M // tm, K // tk),
        in_specs=[
            pl.BlockSpec((tm, tk), lambda i, k: (i, k)),
            pl.BlockSpec((tk, N), lambda i, k: (k, 0)),
            pl.BlockSpec((1, N), lambda i, k: (0, 0)),
            pl.BlockSpec((tm, N), lambda i, k: (i, 0)),   # residual (fetched once per i)
            pl.BlockSpec((1, N), lambda i, k: (0, 0)),
            pl.BlockSpec((1, N), lambda i, k: (0, 0)),
        ],
        out_specs=pl.BlockSpec((tm, N), lambda i, k: (i, 0)),
        scratch_shapes=[pltpu.VMEM((tm, N), jnp.float32)],
        compiler_params=pltpu.CompilerParams(
            dimension_semantics=("parallel", "arbitrary"),
            vmem_limit_bytes=vmem),
    )(x, w, b.reshape(1, N), residual, gamma.reshape(1, N), beta.reshape(1, N))


# ----------------------------------------------------------------------------
# Kernel 3: multi-head scaled-dot-product attention, heads handled in-kernel.
# Activations stay in (B, S, D) layout -> no HBM head transposes.
# Causal mask via broadcasted_iota; padding via a (B, 1, S) additive bias.
# ----------------------------------------------------------------------------
def _attention_kernel(q_ref, k_ref, v_ref, pad_ref, *rest,
                      scale, num_heads, is_causal, has_mask):
    if has_mask:
        mask_ref, o_ref = rest
    else:
        (o_ref,) = rest

    tq = q_ref.shape[1]
    S = k_ref.shape[1]
    D = q_ref.shape[2]
    dh = D // num_heads

    q = q_ref[0].reshape(tq, num_heads, dh)
    k = k_ref[0].reshape(S, num_heads, dh)
    v = v_ref[0].reshape(S, num_heads, dh)

    # scores (H, tq, S): contract dh, batch over heads — no explicit k.T.
    s = jax.lax.dot_general(
        q, k, dimension_numbers=(((2,), (2,)), ((1,), (1,))),
        preferred_element_type=jnp.float32) * scale

    s = s + pad_ref[0]                                    # (1, S) additive pad bias
    if has_mask:
        s = s + mask_ref[...][None, :, :]                 # (tq, S) user mask
    if is_causal:
        q_idx = (jax.lax.broadcasted_iota(jnp.int32, (tq, S), 0)
                 + pl.program_id(1) * tq)
        k_idx = jax.lax.broadcasted_iota(jnp.int32, (tq, S), 1)
        s = s + jnp.where(q_idx >= k_idx, 0.0, _NEG_INF).astype(jnp.float32)[None]

    m = jnp.max(s, axis=-1, keepdims=True)
    p = jnp.exp(s - m)
    l = jnp.sum(p, axis=-1, keepdims=True)
    p = p * pl.reciprocal(l, approx=True)                 # EUP vrcp, ~free

    o = jnp.einsum("hqk,khd->qhd", p.astype(v.dtype), v,
                   preferred_element_type=jnp.float32)
    o_ref[0] = o.reshape(tq, D).astype(o_ref.dtype)


def attention(q, k, v, pad_bias, user_mask, num_heads, is_causal, *, tq_pref=256):
    B, S, D = q.shape
    dh = D // num_heads
    tq = _tile(S, tq_pref, 8)
    scale = 1.0 / (dh ** 0.5)
    has_mask = user_mask is not None

    itm = q.dtype.itemsize
    vmem = _vmem_limit(((1, tq, D), itm), ((1, S, D), itm), ((1, S, D), itm),
                       ((1, 1, S), 4), ((1, tq, D), itm))

    kernel = functools.partial(_attention_kernel, scale=scale,
                               num_heads=num_heads, is_causal=is_causal,
                               has_mask=has_mask)
    in_specs = [
        pl.BlockSpec((1, tq, D), lambda b, qi: (b, qi, 0)),
        pl.BlockSpec((1, S, D), lambda b, qi: (b, 0, 0)),
        pl.BlockSpec((1, S, D), lambda b, qi: (b, 0, 0)),
        pl.BlockSpec((1, 1, S), lambda b, qi: (b, 0, 0)),
    ]
    args = [q, k, v, pad_bias]
    if has_mask:
        in_specs.append(pl.BlockSpec((tq, S), lambda b, qi: (qi, 0)))
        args.append(user_mask.astype(jnp.float32))

    return pl.pallas_call(
        kernel,
        out_shape=jax.ShapeDtypeStruct((B, S, D), q.dtype),
        grid=(B, S // tq),
        in_specs=in_specs,
        out_specs=pl.BlockSpec((1, tq, D), lambda b, qi: (b, qi, 0)),
        compiler_params=pltpu.CompilerParams(
            dimension_semantics=("parallel", "parallel"),
            vmem_limit_bytes=vmem),
    )(*args)


# ----------------------------------------------------------------------------
# One post-LN encoder layer (MHA + ReLU FFN) built from the kernels above.
# TODO(synk): hnn_utils' concrete encoder-layer class is not given; a standard
#             post-norm MHA + FFN layer is used for its forward semantics.
# ----------------------------------------------------------------------------
def encoder_layer_forward(x, p, user_mask, pad_bias, is_causal):
    B, S, D = x.shape
    H = p["num_heads"]
    x2d = x.reshape(B * S, D)

    # fused QKV projection: one pass over x2d instead of three
    qkv = linear(x2d, p["w_qkv"], p["b_qkv"])                  # (B*S, 3D)
    q, k, v = jnp.split(qkv.reshape(B, S, 3 * D), 3, axis=-1)  # each (B, S, D)

    ao = attention(q, k, v, pad_bias, user_mask, H, is_causal)  # (B, S, D)

    # out-projection with fused bias + residual + LayerNorm
    h1 = linear_residual_ln(ao.reshape(B * S, D), p["wo"], p["bo"],
                            x2d, p["ln1_g"], p["ln1_b"])

    ff = linear(h1, p["w1"], p["b1"], activation="relu")
    h2 = linear_residual_ln(ff, p["w2"], p["b2"], h1, p["ln2_g"], p["ln2_b"])
    return h2.reshape(B, S, D)


def transformer_encoder_forward(src, layer_params, mask=None,
                                src_pad_mask=None, is_causal=False):
    B, S, D = src.shape
    if src_pad_mask is None:
        pad_bias = jnp.zeros((B, 1, S), jnp.float32)
    else:
        pad_bias = jnp.where(src_pad_mask, _NEG_INF, 0.0).astype(
            jnp.float32).reshape(B, 1, S)
    user_mask = None if mask is None else mask.astype(jnp.float32)
    out = src
    for p in layer_params:
        out = encoder_layer_forward(out, p, user_mask, pad_bias, is_causal)
    return out


# ----------------------------------------------------------------------------
# Deterministic parameter init
# ----------------------------------------------------------------------------
def init_layer_params(key, d_model, num_heads, dim_ff, dtype=jnp.float32):
    ks = jax.random.split(key, 4)
    s = 1.0 / (d_model ** 0.5)
    return dict(
        num_heads=num_heads,
        w_qkv=jax.random.normal(ks[0], (d_model, 3 * d_model), dtype) * s,
        b_qkv=jnp.zeros((3 * d_model,), dtype),
        wo=jax.random.normal(ks[1], (d_model, d_model), dtype) * s,
        bo=jnp.zeros((d_model,), dtype),
        w1=jax.random.normal(ks[2], (d_model, dim_ff), dtype) * s,
        b1=jnp.zeros((dim_ff,), dtype),
        w2=jax.random.normal(ks[3], (dim_ff, d_model), dtype) * (1.0 / dim_ff ** 0.5),
        b2=jnp.zeros((d_model,), dtype),
        ln1_g=jnp.ones((d_model,), dtype), ln1_b=jnp.zeros((d_model,), dtype),
        ln2_g=jnp.ones((d_model,), dtype), ln2_b=jnp.zeros((d_model,), dtype),
    )


# ----------------------------------------------------------------------------
# Pure-JAX reference (same math, no Pallas)
# ----------------------------------------------------------------------------
def _ref_forward(src, layer_params, mask, src_pad_mask, is_causal):
    def ln(h, g, b, eps=1e-5):
        mu = jnp.mean(h, -1, keepdims=True)
        var = jnp.mean((h - mu) ** 2, -1, keepdims=True)
        return (h - mu) * jax.lax.rsqrt(var + eps) * g + b

    B, S, D = src.shape
    bias = jnp.zeros((B, 1, S, S), jnp.float32)
    if mask is not None:
        bias = bias + mask.astype(jnp.float32)
    if src_pad_mask is not None:
        bias = bias + jnp.where(src_pad_mask, _NEG_INF, 0.0)[:, None, None, :]
    if is_causal:
        bias = bias + jnp.where(jnp.tril(jnp.ones((S, S), bool)), 0.0, _NEG_INF)

    out = src
    for p in layer_params:
        H = p["num_heads"]; dh = D // H
        x2d = out.reshape(B * S, D)
        qkv = x2d @ p["w_qkv"] + p["b_qkv"]
        q, k, v = jnp.split(qkv.reshape(B, S, 3 * D), 3, axis=-1)
        q = q.reshape(B, S, H, dh).transpose(0, 2, 1, 3)
        k = k.reshape(B, S, H, dh).transpose(0, 2, 1, 3)
        v = v.reshape(B, S, H, dh).transpose(0, 2, 1, 3)
        s = jnp.einsum("bhqd,bhkd->bhqk", q, k) / (dh ** 0.5) + bias
        a = jax.nn.softmax(s, axis=-1)
        o = jnp.einsum("bhqk,bhkd->bhqd", a, v).transpose(0, 2, 1, 3).reshape(B * S, D)
        o = o @ p["wo"] + p["bo"]
        h1 = ln(x2d + o, p["ln1_g"], p["ln1_b"])
        ff = jnp.maximum(h1 @ p["w1"] + p["b1"], 0.0) @ p["w2"] + p["b2"]
        h2 = ln(h1 + ff, p["ln2_g"], p["ln2_b"])
        out = h2.reshape(B, S, D)
    return out


if __name__ == "__main__":
    B, S, D, H, FF = 2, 8, 32, 4, 64
    NUM_LAYERS = 2

    key = jax.random.PRNGKey(0)
    k_src, k_params = jax.random.split(key)
    src = jax.random.normal(k_src, (B, S, D), jnp.float32)

    layer_keys = jax.random.split(k_params, NUM_LAYERS)
    layer_params = [init_layer_params(k, D, H, FF) for k in layer_keys]

    # Pad the last two positions of batch 1; run causal.
    src_pad_mask = jnp.zeros((B, S), bool).at[1, -2:].set(True)
    is_causal = True

    out = transformer_encoder_forward(src, layer_params, mask=None,
                                      src_pad_mask=src_pad_mask,
                                      is_causal=is_causal)
    out = jax.block_until_ready(out)

    ref = _ref_forward(src, layer_params, None, src_pad_mask, is_causal)
    assert out.shape == (B, S, D)
    assert jnp.allclose(out, ref, atol=2e-2, rtol=2e-2), "mismatch vs reference"

    print("KERNEL_OK")
</pallas_src>

<mosaic_0001>
module attributes {stable_mosaic.version = 11 : i64} {
  func.func @_matmul_bias_kernel(%arg0: i32, %arg1: i32, %arg2: i32, %arg3: memref<16x32xf32, #tpu.memory_space<vmem>>, %arg4: memref<32x96xf32, #tpu.memory_space<vmem>>, %arg5: memref<1x96xf32, #tpu.memory_space<vmem>>, %arg6: memref<16x96xf32, #tpu.memory_space<vmem>>, %arg7: memref<16x96xf32, #tpu.memory_space<vmem>>) attributes {dimension_semantics = [#tpu.dimension_semantics<parallel>, #tpu.dimension_semantics<parallel>, #tpu.dimension_semantics<arbitrary>], iteration_bounds = array<i64: 1, 1, 1>, scalar_prefetch = 0 : i64, scratch_operands = 1 : i64, tpu.core_type = #tpu.core_type<tc>, window_params = [{transform_indices = @transform_0, window_bounds = array<i64: 16, 32>}, {transform_indices = @transform_1, window_bounds = array<i64: 32, 96>}, {transform_indices = @transform_2, window_bounds = array<i64: 1, 96>}, {transform_indices = @transform_3, window_bounds = array<i64: 16, 96>}]} {
    %c0_i32 = arith.constant 0 : i32
    %0 = arith.cmpi eq, %arg2, %c0_i32 : i32
    %1 = arith.extui %0 : i1 to i32
    %c0_i32_0 = arith.constant 0 : i32
    %2 = arith.cmpi ne, %1, %c0_i32_0 : i32
    scf.if %2 {
      %cst_10 = arith.constant 0.000000e+00 : f32
      %12 = vector.broadcast %cst_10 : f32 to vector<16x96xf32>
      %c0_11 = arith.constant 0 : index
      %c0_12 = arith.constant 0 : index
      %13 = vector.load %arg7[%c0_11, %c0_12] : memref<16x96xf32, #tpu.memory_space<vmem>>, vector<16x96xf32>
      tpu.vector_store %arg7[%c0_11, %c0_12], %12 {strides = array<i32>} : memref<16x96xf32, #tpu.memory_space<vmem>>, vector<16x96xf32>,
    } else {
    }
    %c0 = arith.constant 0 : index
    %c0_1 = arith.constant 0 : index
    %3 = vector.load %arg7[%c0, %c0_1] : memref<16x96xf32, #tpu.memory_space<vmem>>, vector<16x96xf32>
    %c0_2 = arith.constant 0 : index
    %c0_3 = arith.constant 0 : index
    %4 = vector.load %arg3[%c0_2, %c0_3] : memref<16x32xf32, #tpu.memory_space<vmem>>, vector<16x32xf32>
    %c0_4 = arith.constant 0 : index
    %c0_5 = arith.constant 0 : index
    %5 = vector.load %arg4[%c0_4, %c0_5] : memref<32x96xf32, #tpu.memory_space<vmem>>, vector<32x96xf32>
    %cst = arith.constant dense<0.000000e+00> : vector<16x96xf32>
    %6 = tpu.matmul %4, %5, %cst {dimension_numbers = #tpu.dot_dimension_numbers<[1], [0], [0], [1], [0, 0, 1, 1], [], []>} : vector<16x32xf32>, vector<32x96xf32>, vector<16x96xf32> -> vector<16x96xf32>
    %7 = arith.addf %3, %6 : vector<16x96xf32>
    %c0_6 = arith.constant 0 : index
    %c0_7 = arith.constant 0 : index
    %8 = vector.load %arg7[%c0_6, %c0_7] : memref<16x96xf32, #tpu.memory_space<vmem>>, vector<16x96xf32>
    tpu.vector_store %arg7[%c0_6, %c0_7], %7 {strides = array<i32>} : memref<16x96xf32, #tpu.memory_space<vmem>>, vector<16x96xf32>,
    %c0_i32_8 = arith.constant 0 : i32
    %9 = arith.cmpi eq, %arg2, %c0_i32_8 : i32
    %10 = arith.extui %9 : i1 to i32
    %c0_i32_9 = arith.constant 0 : i32
    %11 = arith.cmpi ne, %10, %c0_i32_9 : i32
    scf.if %11 {
      %c0_10 = arith.constant 0 : index
      %c0_11 = arith.constant 0 : index
      %12 = vector.load %arg7[%c0_10, %c0_11] : memref<16x96xf32, #tpu.memory_space<vmem>>, vector<16x96xf32>
      %c0_12 = arith.constant 0 : index
      %c0_13 = arith.constant 0 : index
      %13 = vector.load %arg5[%c0_12, %c0_13] : memref<1x96xf32, #tpu.memory_space<vmem>>, vector<1x96xf32>
      %14 = vector.broadcast %13 : vector<1x96xf32> to vector<16x96xf32>
      %15 = arith.addf %12, %14 : vector<16x96xf32>
      %c0_14 = arith.constant 0 : index
      %c0_15 = arith.constant 0 : index
      %16 = vector.load %arg6[%c0_14, %c0_15] : memref<16x96xf32, #tpu.memory_space<vmem>>, vector<16x96xf32>
      tpu.vector_store %arg6[%c0_14, %c0_15], %15 {strides = array<i32>} : memref<16x96xf32, #tpu.memory_space<vmem>>, vector<16x96xf32>,
    } else {
    }
    return
  }
  func.func @transform_0(%arg0: i32, %arg1: i32, %arg2: i32) -> (i32, i32) {
    %c0_i32 = arith.constant 0 : i32
    return %arg0, %arg2 : i32, i32
  }
  func.func @transform_1(%arg0: i32, %arg1: i32, %arg2: i32) -> (i32, i32) {
    %c0_i32 = arith.constant 0 : i32
    return %arg2, %arg1 : i32, i32
  }
  func.func @transform_2(%arg0: i32, %arg1: i32, %arg2: i32) -> (i32, i32) {
    %c0_i32 = arith.constant 0 : i32
    %c0_i32_0 = arith.constant 0 : i32
    return %c0_i32, %arg1 : i32, i32
  }
  func.func @transform_3(%arg0: i32, %arg1: i32, %arg2: i32) -> (i32, i32) {
    %c0_i32 = arith.constant 0 : i32
    return %arg0, %arg1 : i32, i32
  }
}

</mosaic_0001>

<llo_original>
// kernel: tpu_custom_call.1
$region0: #{tpu_custom_call.1}
  #allocation0 [shape = 'u32[]', space=smem, size = 0x4, offset = 0x4, fixed_abs, tag = 'smem constant byte address 0x4 - core index']
  #allocation1 [shape = 'u32[144,128]{1,0:T(1,128)}', space=vmem, size = 0x12000, scoped, tag = 'internal scratch']
  #allocation2 [shape = 'f32[16,96]{1,0:T(8,128)}', space=vmem, size = 0x2000, scoped, tag = 'scratch operand']
  %s0 = inlined_call_operand.hbm [shape: f32[16,32], index: 0, kind: input, shape index: {}]
  %s1 = inlined_call_operand.hbm [shape: f32[32,96], index: 1, kind: input, shape index: {}]
  %s2 = inlined_call_operand.vmem [shape: f32[1,96], index: 2, kind: input, shape index: {}]
  %s3 = inlined_call_operand.hbm [shape: f32[16,96], index: 3, kind: output, shape index: {}]
  %s4 = sld [smem:[#allocation0]]
  $region38: #{tpu_custom_call.1} parent=0
    _
  %s6 = ssub.s32 1, %s4
  %s7 = scalar_select 0, %s6, %s4
  $region1: #{tpu_custom_call.1} parent=0
    #allocation3 [shape = 'u8[8192]{0}', space=vmem, size = 0x2000, scoped, tag = 'input window, operand 0, single buffered']
    #allocation4 [shape = 's32[1]{0}', space=sflag, size = 0x4, scoped, tag = 'scoped memory for tpu_custom_call.1']
    #allocation5 [shape = 's32[1]{0}', space=sflag, size = 0x4, scoped, tag = 'scoped memory for tpu_custom_call.1']
    #allocation6 [shape = 'u8[16384]{0}', space=vmem, size = 0x4000, scoped, tag = 'input window, operand 1, single buffered']
    #allocation7 [shape = 's32[1]{0}', space=sflag, size = 0x4, scoped, tag = 'scoped memory for tpu_custom_call.1']
    #allocation8 [shape = 'u8[8192]{0}', space=vmem, size = 0x2000, scoped, tag = 'output window, operand 0, single buffered']
    %8 = vsyncpa [#allocation4], 0
    %9 = vsyncpa [#allocation7], 0
    %10 = vsyncpa [#allocation5], 0
    // Predicated region
    $region2: #{tpu_custom_call.1} parent=1 // pred_check
      _
    $region3: #{tpu_custom_call.1} parent=1 // pred_check_branch
      %12 = sbr.rel (0) target = $region5
    $region4: #{tpu_custom_call.1} parent=1 // pred_region
      %s14 = ssub.s32 256, 256
      %15 = vsyncadd [#allocation4], %s14
      %s16 = sshll.u32 [#allocation3], 4
      %s17 = int_to_ptr.vmem [resolvable:$true] %s16
      %22 = dma.hbm_to_vmem [thread:$0]  %s0, 256, %s17, [#allocation4], 128, 128, 8
    $region5: #{tpu_custom_call.1} parent=1 // pred_fallthru
      _
    // Predicated region
    $region6: #{tpu_custom_call.1} parent=1 // pred_check
      _
    $region7: #{tpu_custom_call.1} parent=1 // pred_check_branch
      %24 = sbr.rel (0) target = $region9
    $region8: #{tpu_custom_call.1} parent=1 // pred_region
      %s26 = ssub.s32 512, 512
      %27 = vsyncadd [#allocation7], %s26
      %s28 = sshll.u32 [#allocation6], 4
      %s29 = int_to_ptr.vmem [resolvable:$true] %s28
      %34 = dma.hbm_to_vmem [thread:$0]  %s1, 512, %s29, [#allocation7], 128, 128, 8
    $region9: #{tpu_custom_call.1} parent=1 // pred_fallthru
      _
    // Predicated region
    $region10: #{tpu_custom_call.1} parent=1 // pred_check
      _
    $region11: #{tpu_custom_call.1} parent=1 // pred_check_branch
      %36 = sbr.rel (0) target = $region13
    $region12: #{tpu_custom_call.1} parent=1 // pred_region
      _
    $region13: #{tpu_custom_call.1} parent=1 // pred_fallthru
      _
    // Predicated region
    $region14: #{tpu_custom_call.1} parent=1 // pred_check
      _
    $region15: #{tpu_custom_call.1} parent=1 // pred_check_branch
      %38 = sbr.rel (0) target = $region17
    $region16: #{tpu_custom_call.1} parent=1 // pred_region
      %39 = dma.done [#allocation4], 256
    $region17: #{tpu_custom_call.1} parent=1 // pred_fallthru
      _
    // Predicated region
    $region18: #{tpu_custom_call.1} parent=1 // pred_check
      _
    $region19: #{tpu_custom_call.1} parent=1 // pred_check_branch
      %41 = sbr.rel (0) target = $region21
    $region20: #{tpu_custom_call.1} parent=1 // pred_region
      %42 = dma.done [#allocation7], 512
    $region21: #{tpu_custom_call.1} parent=1 // pred_fallthru
      _
    %p43 = scmp.eq.s32.totalorder 0, 0
    // Predicated region
    $region22: #{tpu_custom_call.1} parent=1 // pred_check
      %p44 = pneg %p43
    $region23: #{tpu_custom_call.1} parent=1 // pred_check_branch
      %46 = sbr.rel (%p44) target = $region25
    $region24: #{tpu_custom_call.1} parent=1 // pred_region
      %vm47 = vcmask 785408
      %48 = vst.msk [vmem:[#allocation2] sm:$0xff] %vm47, 0.0
      %49 = vst.msk [vmem:[#allocation2 + $0x8] sm:$0xff] %vm47, 0.0
    $region25: #{tpu_custom_call.1} parent=1 // pred_fallthru
      _
    %v50 = vld [vmem:[#allocation2] sm:$0xff]
    %v51 = vld [vmem:[#allocation2 + $0x8] sm:$0xff]
    %v52 = vld [vmem:[#allocation3] sm:$0xff]
    %v53 = vld [vmem:[#allocation3 + $0x8] sm:$0xff]
    %v54 = vld [vmem:[#allocation6] sm:$0xff]
    %v55 = vld [vmem:[#allocation6 + $0x8] sm:$0xff]
    %v56 = vld [vmem:[#allocation6 + $0x10] sm:$0xff]
    %v57 = vld [vmem:[#allocation6 + $0x18] sm:$0xff]
    %vm58 = vcmask 261120
    %v60 = vsel %vm58, %v52, 0
    %v63 = vsel %vm58, %v53, 0
    %65 = vmatprep.subr.mxu0 0.0
    %66 = vmatpush1.msra.mxu0 %v54
    %67 = vmatprep.subr.mxu0 0.0
    %68 = vmatpush1.msra.mxu0 %v55
    %69 = vmatprep.subr.mxu0 0.0
    %70 = vmatpush1.msra.mxu0 %v56
    %71 = vmatprep.subr.mxu0 0.0
    %72 = vmatpush1.msra.mxu0 %v57
    %73 = vmatprep.subr.mxu0 0.0
    %74 = vmatpush1.msra.mxu0 0.0
    %75 = vmatprep.subr.mxu0 0.0
    %76 = vmatpush1.msra.mxu0 0.0
    %77 = vmatprep.subr.mxu0 0.0
    %78 = vmatpush1.msra.mxu0 0.0
    %79 = vmatprep.subr.mxu0 0.0
    %80 = vmatpush1.msra.mxu0 0.0
    %81 = vmatprep.subr.mxu0 0.0
    %82 = vmatpush1.msra.mxu0 0.0
    %83 = vmatprep.subr.mxu0 0.0
    %84 = vmatpush1.msra.mxu0 0.0
    %85 = vmatprep.subr.mxu0 0.0
    %86 = vmatpush1.msra.mxu0 0.0
    %87 = vmatprep.subr.mxu0 0.0
    %88 = vmatpush1.msra.mxu0 0.0
    %89 = vmatprep.subr.mxu0 0.0
    %90 = vmatpush1.msra.mxu0 0.0
    %91 = vmatprep.subr.mxu0 0.0
    %92 = vmatpush1.msra.mxu0 0.0
    %93 = vmatprep.subr.mxu0 0.0
    %94 = vmatpush1.msra.mxu0 0.0
    %95 = vmatprep.subr.mxu0 0.0
    %96 = vmatpush1.msra.mxu0 0.0
    %97 = vmatprep.subr.mxu0 0.0
    %98 = vmatpush1.msra.mxu0 0.0
    %99 = vmatprep.subr.mxu0 0.0
    %100 = vmatpush1.msra.mxu0 0.0
    %101 = vmatprep.subr.mxu0 0.0
    %102 = vmatpush1.msra.mxu0 0.0
    %103 = vmatprep.subr.mxu0 0.0
    %104 = vmatpush1.msra.mxu0 0.0
    %105 = vmatprep.subr.mxu0 0.0
    %106 = vmatpush1.msra.mxu0 0.0
    %107 = vmatprep.subr.mxu0 0.0
    %108 = vmatpush1.msra.mxu0 0.0
    %109 = vmatprep.subr.mxu0 0.0
    %110 = vmatpush1.msra.mxu0 0.0
    %111 = vmatprep.subr.mxu0 0.0
    %112 = vmatpush1.msra.mxu0 0.0
    %113 = vmatprep.subr.mxu0 0.0
    %114 = vmatpush1.msra.mxu0 0.0
    %115 = vmatprep.subr.mxu0 0.0
    %116 = vmatpush1.msra.mxu0 0.0
    %117 = vmatprep.subr.mxu0 0.0
    %118 = vmatpush1.msra.mxu0 0.0
    %119 = vmatprep.subr.mxu0 0.0
    %120 = vmatpush1.msra.mxu0 0.0
    %121 = vmatprep.subr.mxu0 0.0
    %122 = vmatpush1.msra.mxu0 0.0
    %123 = vmatprep.subr.mxu0 0.0
    %124 = vmatpush1.msra.mxu0 0.0
    %125 = vmatprep.subr.mxu0 0.0
    %126 = vmatpush1.msra.mxu0 0.0
    %127 = vmatprep.subr.mxu0 0.0
    %128 = vmatpush1.msra.mxu0 0.0
    %129 = vmatprep.mubr.f32.mxu0 0.0
    %130 = vmatmul.mubr.f32.gmra.mrb[0].mxu0 %v60
    %v131 = vpop.f32.mrb[0].mxu0
    %v132 = vadd.f32 0.0, %v131
    %v133 = vpop.f32.mrb[0].mxu0
    %134 = vmatprep.mubr.f32.mxu0 0.0
    %135 = vmatmul.mubr.f32.gmra.mrb[0].mxu0 %v63
    %v136 = vpop.f32.mrb[0].mxu0
    %v137 = vadd.f32 0.0, %v136
    %v138 = vpop.f32.mrb[0].mxu0
    %139 = vdwg.mxu0
    %v140 = vadd.f32 %v50, %v132
    %v141 = vadd.f32 %v51, %v137
    %vm142 = vcmask 785408
    %143 = vst.msk [vmem:[#allocation2] sm:$0xff] %vm142, %v140
    %144 = vst.msk [vmem:[#allocation2 + $0x8] sm:$0xff] %vm142, %v141
    // Predicated region
    $region26: #{tpu_custom_call.1} parent=1 // pred_check
      %p145 = pneg %p43
    $region27: #{tpu_custom_call.1} parent=1 // pred_check_branch
      %147 = sbr.rel (%p145) target = $region29
    $region28: #{tpu_custom_call.1} parent=1 // pred_region
      %v148 = vld [vmem:[#allocation2] sm:$0xff]
      %v149 = vld [vmem:[#allocation2 + $0x8] sm:$0xff]
      %v150 = vld [vmem:[%s2] sm:$0x1]
      %v152 = vlaneseq
      %v153 = vshrl.u32 %v152, 7
      %v154 = vsub.s32 0, %v153
      %v155 = vrot.slane %v150, %v154
      %v157 = vadd.f32 %v148, %v155
      %v158 = vadd.f32 %v149, %v155
      %159 = vst.msk [vmem:[#allocation8] sm:$0xff] %vm142, %v157
      %160 = vst.msk [vmem:[#allocation8 + $0x8] sm:$0xff] %vm142, %v158
    $region29: #{tpu_custom_call.1} parent=1 // pred_fallthru
      _
    // Predicated region
    $region30: #{tpu_custom_call.1} parent=1 // pred_check
      _
    $region31: #{tpu_custom_call.1} parent=1 // pred_check_branch
      %162 = sbr.rel (0) target = $region33
    $region32: #{tpu_custom_call.1} parent=1 // pred_region
      %s164 = ssub.s32 256, 256
      %165 = vsyncadd [#allocation5], %s164
      %s166 = sshll.u32 [#allocation8], 4
      %s167 = int_to_ptr.vmem [resolvable:$true] %s166
      %172 = dma.vmem_to_hbm [thread:$0]  %s167, 256, %s3, [#allocation5], 128, 128, 8
    $region33: #{tpu_custom_call.1} parent=1 // pred_fallthru
      _
    // Predicated region
    $region34: #{tpu_custom_call.1} parent=1 // pred_check
      _
    $region35: #{tpu_custom_call.1} parent=1 // pred_check_branch
      %174 = sbr.rel (0) target = $region37
    $region36: #{tpu_custom_call.1} parent=1 // pred_region
      %175 = dma.done [#allocation5], 256
    $region37: #{tpu_custom_call.1} parent=1 // pred_fallthru
      _
    %176 = vsyncpa [#allocation4], 1
    %177 = vsyncpa [#allocation7], 1
    %178 = vsyncpa [#allocation5], 1

</llo_original>
